<compile_context>
chip_gen: v5e
topology: v5e:2x2
jax: 0.10.0
libtpu: 0.0.40
codegen_flags: <defaults>
</compile_context>

<pallas_src>
import jax
import jax.numpy as jnp
from jax.experimental import pallas as pl
from jax.experimental.pallas import tpu as pltpu

_LANES = 128


def _drop_path_kernel(s_ref, x_ref, o_ref):
    # s_ref: (tr, 1) f32 — 0.0 or 1/keep_prob per row.
    # x_ref / o_ref: (tr, 128) blocks in the input's dtype.
    o_ref[...] = (x_ref[...] * s_ref[...]).astype(o_ref.dtype)


def _sublane_multiple(dtype):
    itemsize = jnp.dtype(dtype).itemsize
    return {4: 8, 2: 16, 1: 32}.get(itemsize, 8)


def _is_v7x():
    try:
        return "v7" in jax.devices()[0].device_kind.lower()
    except Exception:
        return False


def drop_path(x, drop_prob, training, key):
    """Pallas-backed equivalent of torch drop_path(x, drop_prob, training)."""
    if drop_prob is None or float(drop_prob) == 0.0 or not training:
        return x
    drop_prob = float(drop_prob)
    if drop_prob >= 1.0:
        # keep_prob == 0 would produce inf/nan from 1/keep_prob; return zeros
        # instead (documented deviation from torch, which emits nan here).
        return jnp.zeros_like(x)
    keep_prob = 1.0 - drop_prob

    B = x.shape[0]
    N = 1
    for d in x.shape[1:]:
        N *= d

    # Per-sample uniforms (analogue of torch.rand((B, 1, ..., 1))) and the
    # binarized, pre-scaled mask: exactly 0.0 or 1/keep_prob, in f32.
    u = jax.random.uniform(key, (B,), dtype=jnp.float32)
    scale = jnp.floor(keep_prob + u) * (1.0 / keep_prob)

    if N % _LANES != 0 or N == 0:
        # Ragged feature size: a lane-dense Pallas layout would need pad+slice
        # round trips (~3x HBM bytes for a purely bandwidth-bound op). The fused
        # XLA broadcast multiply is strictly better here.
        bshape = (B,) + (1,) * (x.ndim - 1)
        return (x * scale.reshape(bshape)).astype(x.dtype)

    rows_per_sample = N // _LANES
    T = B * rows_per_sample
    x_rows = x.reshape(T, _LANES)
    # Per-row scale lets blocks span sample boundaries (big DMAs even for small
    # per-sample activations) at ~1% extra HBM traffic.
    scale_rows = jnp.broadcast_to(scale[:, None], (B, rows_per_sample)).reshape(T, 1)

    # Row-tile size from a VMEM budget for the pipelined buffers (in + out +
    # scale, double-buffered; the (tr, 1) scale block is lane-padded to 128).
    itemsize = jnp.dtype(x.dtype).itemsize
    budget = (24 << 20) if _is_v7x() else (16 << 20)   # v7x: ~4 MiB x-blocks
    per_row = 2 * (2 * _LANES * itemsize + _LANES * 4)
    max_rows = max(8, budget // per_row)
    sub = _sublane_multiple(x.dtype)
    if T <= max_rows:
        tr = T                                    # full extent — always legal
    else:
        tr = max(sub, (max_rows // sub) * sub)    # dtype-specific sublane packing

    # NOTE: if DropPath sits next to a residual add (or a Pallas producer),
    # prefer folding `* scale` into that op's epilogue — a standalone kernel can
    # at best match a fused multiply. Kept standalone here to exercise Pallas.
    out = pl.pallas_call(
        _drop_path_kernel,
        out_shape=jax.ShapeDtypeStruct((T, _LANES), x.dtype),
        grid=(pl.cdiv(T, tr),),
        in_specs=[
            pl.BlockSpec((tr, 1), lambda i: (i, 0)),
            pl.BlockSpec((tr, _LANES), lambda i: (i, 0)),
        ],
        out_specs=pl.BlockSpec((tr, _LANES), lambda i: (i, 0)),
        compiler_params=pltpu.CompilerParams(
            dimension_semantics=("parallel",),
            vmem_limit_bytes=budget + (8 << 20),
        ),
    )(scale_rows, x_rows)

    return out.reshape(x.shape)


class DropPath:
    """Drop paths (stochastic depth) per sample — JAX/Pallas version."""

    def __init__(self, drop_prob=None):
        self.drop_prob = drop_prob
        self.training = True  # no parameters; only a mode flag

    def __call__(self, x, key):
        return drop_path(x, self.drop_prob, self.training, key)


if __name__ == "__main__":
    key = jax.random.PRNGKey(0)
    kx, km = jax.random.split(key)

    B, S, D = 2, 8, 32                       # N = 256 -> lane-dense Pallas path
    x = jax.random.normal(kx, (B, S, D), dtype=jnp.float32)

    mod = DropPath(drop_prob=0.25)

    # Training mode: Pallas kernel path (f32).
    y = jax.block_until_ready(mod(x, km))

    # Pure-JAX reference using the same per-sample uniforms.
    keep_prob = 1.0 - 0.25
    u = jax.random.uniform(km, (B,), dtype=jnp.float32)
    scale = jnp.floor(keep_prob + u) * (1.0 / keep_prob)
    ref = x * scale[:, None, None]
    assert y.shape == x.shape and y.dtype == x.dtype
    assert jnp.allclose(y, ref, rtol=1e-5, atol=1e-6), "kernel mismatch vs reference"

    # bf16 input exercises the f32-multiply + downcast path (16-sublane packing).
    xb = x.astype(jnp.bfloat16)
    yb = jax.block_until_ready(mod(xb, km))
    refb = (xb * scale[:, None, None]).astype(jnp.bfloat16)
    assert yb.dtype == jnp.bfloat16
    assert jnp.allclose(yb.astype(jnp.float32), refb.astype(jnp.float32),
                        rtol=1e-2, atol=1e-2)

    # Ragged feature size (N % 128 != 0): fused XLA fallback, no pad copies.
    xr = jax.random.normal(kx, (B, 5, 7), dtype=jnp.float32)
    yr = jax.block_until_ready(mod(xr, km))
    assert jnp.allclose(yr, xr * scale[:, None, None], rtol=1e-5, atol=1e-6)

    # Eval mode: identity (no kernel launch), matching torch semantics.
    mod.training = False
    assert jnp.array_equal(jax.block_until_ready(mod(x, km)), x)

    # drop_prob == 1.0 edge case: zeros, no inf/nan.
    mod_all = DropPath(drop_prob=1.0)
    assert jnp.array_equal(jax.block_until_ready(mod_all(x, km)), jnp.zeros_like(x))

    print("KERNEL_OK")
</pallas_src>

<mosaic_0001>
module attributes {stable_mosaic.version = 11 : i64} {
  func.func @_drop_path_kernel(%arg0: i32, %arg1: memref<4x1xf32, #tpu.memory_space<vmem>>, %arg2: memref<4x128xf32, #tpu.memory_space<vmem>>, %arg3: memref<4x128xf32, #tpu.memory_space<vmem>>) attributes {dimension_semantics = [#tpu.dimension_semantics<parallel>], iteration_bounds = array<i64: 1>, scalar_prefetch = 0 : i64, scratch_operands = 0 : i64, tpu.core_type = #tpu.core_type<tc>, window_params = [{transform_indices = @transform_0, window_bounds = array<i64: 4, 1>}, {transform_indices = @transform_1, window_bounds = array<i64: 4, 128>}, {transform_indices = @transform_2, window_bounds = array<i64: 4, 128>}]} {
    %c0 = arith.constant 0 : index
    %c0_0 = arith.constant 0 : index
    %0 = vector.load %arg2[%c0, %c0_0] : memref<4x128xf32, #tpu.memory_space<vmem>>, vector<4x128xf32>
    %c0_1 = arith.constant 0 : index
    %c0_2 = arith.constant 0 : index
    %1 = vector.load %arg1[%c0_1, %c0_2] : memref<4x1xf32, #tpu.memory_space<vmem>>, vector<4x1xf32>
    %2 = vector.broadcast %1 : vector<4x1xf32> to vector<4x128xf32>
    %3 = arith.mulf %0, %2 : vector<4x128xf32>
    %c0_3 = arith.constant 0 : index
    %c0_4 = arith.constant 0 : index
    %4 = vector.load %arg3[%c0_3, %c0_4] : memref<4x128xf32, #tpu.memory_space<vmem>>, vector<4x128xf32>
    tpu.vector_store %arg3[%c0_3, %c0_4], %3 {strides = array<i32>} : memref<4x128xf32, #tpu.memory_space<vmem>>, vector<4x128xf32>,
    return
  }
  func.func @transform_0(%arg0: i32) -> (i32, i32) {
    %c0_i32 = arith.constant 0 : i32
    %c0_i32_0 = arith.constant 0 : i32
    return %arg0, %c0_i32 : i32, i32
  }
  func.func @transform_1(%arg0: i32) -> (i32, i32) {
    %c0_i32 = arith.constant 0 : i32
    %c0_i32_0 = arith.constant 0 : i32
    return %arg0, %c0_i32 : i32, i32
  }
  func.func @transform_2(%arg0: i32) -> (i32, i32) {
    %c0_i32 = arith.constant 0 : i32
    %c0_i32_0 = arith.constant 0 : i32
    return %arg0, %c0_i32 : i32, i32
  }
}

</mosaic_0001>

<llo_original>
// kernel: tpu_custom_call.1
$region0: #{tpu_custom_call.1}
  #allocation0 [shape = 'u32[]', space=smem, size = 0x4, offset = 0x4, fixed_abs, tag = 'smem constant byte address 0x4 - core index']
  #allocation1 [shape = 'u32[72,128]{1,0:T(1,128)}', space=vmem, size = 0x9000, scoped, tag = 'internal scratch']
  %s0 = inlined_call_operand.vmem [shape: f32[4,1], index: 0, kind: input, shape index: {}]
  %s1 = inlined_call_operand.vmem [shape: f32[4,128], index: 1, kind: input, shape index: {}]
  %s2 = inlined_call_operand.hbm [shape: f32[4,128], index: 2, kind: output, shape index: {}]
  %s3 = sld [smem:[#allocation0]]
  $region18: #{tpu_custom_call.1} parent=0
    _
  %s5 = ssub.s32 1, %s3
  %s6 = scalar_select 0, %s5, %s3
  $region1: #{tpu_custom_call.1} parent=0
    #allocation2 [shape = 'u8[2048]{0}', space=vmem, size = 0x800, scoped, tag = 'output window, operand 0, single buffered']
    #allocation3 [shape = 's32[1]{0}', space=sflag, size = 0x4, scoped, tag = 'scoped memory for tpu_custom_call.1']
    %7 = vsyncpa [#allocation3], 0
    // Predicated region
    $region2: #{tpu_custom_call.1} parent=1 // pred_check
      _
    $region3: #{tpu_custom_call.1} parent=1 // pred_check_branch
      %9 = sbr.rel (0) target = $region5
    $region4: #{tpu_custom_call.1} parent=1 // pred_region
      _
    $region5: #{tpu_custom_call.1} parent=1 // pred_fallthru
      _
    // Predicated region
    $region6: #{tpu_custom_call.1} parent=1 // pred_check
      _
    $region7: #{tpu_custom_call.1} parent=1 // pred_check_branch
      %11 = sbr.rel (0) target = $region9
    $region8: #{tpu_custom_call.1} parent=1 // pred_region
      _
    $region9: #{tpu_custom_call.1} parent=1 // pred_fallthru
      _
    %v12 = vld [vmem:[%s1] sm:$0xf]
    %v13 = vld [vmem:[%s0] sm:$0xf]
    %15 = vset.pattern.permute.xlu0 0
    %16 = vperm.xlu0 %15, %v13
    %v17 = vpop.permute.xlu0 %16
    %v19 = vmul.f32 %v12, %v17
    %20 = vst [vmem:[#allocation2] sm:$0xf] %v19
    // Predicated region
    $region10: #{tpu_custom_call.1} parent=1 // pred_check
      _
    $region11: #{tpu_custom_call.1} parent=1 // pred_check_branch
      %22 = sbr.rel (0) target = $region13
    $region12: #{tpu_custom_call.1} parent=1 // pred_region
      %24 = vsyncadd [#allocation3], 0
      %s26 = sshll.u32 [#allocation2], 4
      %s27 = int_to_ptr.vmem [resolvable:$true] %s26
      %s28 = sshll.u32 %s2, 4
      %s29 = int_to_ptr.hbm [resolvable:$true] %s28
      %31 = dma.vmem_to_hbm [thread:$0]  %s27, 64, %s29, [#allocation3]
    $region13: #{tpu_custom_call.1} parent=1 // pred_fallthru
      _
    // Predicated region
    $region14: #{tpu_custom_call.1} parent=1 // pred_check
      _
    $region15: #{tpu_custom_call.1} parent=1 // pred_check_branch
      %33 = sbr.rel (0) target = $region17
    $region16: #{tpu_custom_call.1} parent=1 // pred_region
      %35 = dma.done [#allocation3], 64
    $region17: #{tpu_custom_call.1} parent=1 // pred_fallthru
      _
    %36 = vsyncpa [#allocation3], 1

</llo_original>
